<compile_context>
chip_gen: v7x
topology: tpu7x:2x2x1
jax: 0.10.0
libtpu: 0.0.40
codegen_flags: <defaults>
</compile_context>

<pallas_src>
import jax
import jax.numpy as jnp
from jax.experimental import pallas as pl
from jax.experimental.pallas import tpu as pltpu


def _implicit_a_kernel(x_ref, imp_ref, o_ref):
    # x_ref  : VMEM (TILE_ROWS, TILE_L)  activation tile
    # imp_ref: VMEM (TILE_ROWS, 1)       per-row implicit bias (lane-broadcast)
    # o_ref  : VMEM (TILE_ROWS, TILE_L)
    o_ref[...] = x_ref[...] + imp_ref[...]


def _tpu_generation():
    """Best-effort TPU generation detection from the device kind string."""
    try:
        kind = jax.devices()[0].device_kind.lower()
    except Exception:
        return None
    if "v5 lite" in kind or "v5e" in kind or "v5lite" in kind:
        return "v5e"
    if "v6" in kind:
        return "v6e"
    if "v7" in kind or "7x" in kind:
        return "v7x"
    return None


def _select_tiles(R, L, itemsize):
    """Pick (tile_rows, tile_l, vmem_needed_bytes) for a (R, L) streaming add."""
    gen = _tpu_generation()
    if gen == "v7x":
        # Faster HBM -> bigger tiles to amortize the ~0.35 us/step overhead;
        # 2 TensorCores -> want several steps on the parallel row axis.
        target_bytes = 5 << 20
        budget_bytes = 24 << 20
        min_row_steps = 4
    elif gen == "v5e":
        # 16 MiB scoped-VMEM default; 2 MiB tiles already run ~5 us/step here.
        target_bytes = 2 << 20
        budget_bytes = 12 << 20
        min_row_steps = 2
    else:  # v6e and unknown generations
        target_bytes = 3 << 20
        budget_bytes = 24 << 20
        min_row_steps = 2

    # dtype-dependent sublane packing multiple: f32 -> 8, bf16 -> 16, int8 -> 32
    sublane = max(8, 32 // itemsize)
    budget_elems = budget_bytes // itemsize

    def vmem_elems(rows, lanes):
        # x in + out, each double-buffered (x2), plus the (rows, 1) imp column
        # which physically pads every row to a full 128-lane vreg, also x2.
        return 4 * rows * lanes + 2 * rows * 128

    # --- Lane tiling: only when even a minimal (sublane-row) full-L tile
    # overflows the VMEM budget (e.g. very large H*W).
    if L <= 128 or vmem_elems(sublane, L) <= budget_elems:
        tile_l = L  # full-extent last dim is always a legal block dim
    else:
        max_lanes = (budget_elems - 2 * sublane * 128) // (4 * sublane)
        tile_l = max(128, (max_lanes // 128) * 128)  # multiple of 128 < L
        tile_l = min(tile_l, L)

    # --- Row tiling toward the per-tile byte target, kept inside the budget.
    rows_target = (target_bytes // max(1, tile_l * itemsize)) // sublane * sublane
    rows_budget = (budget_elems // (4 * tile_l + 2 * 128)) // sublane * sublane
    rows = max(sublane, min(rows_target, rows_budget))

    # --- Ensure multiple grid steps on the parallel row axis when R allows it
    # (v7x shards "parallel" axes across its 2 TensorCores).
    if min_row_steps > 1:
        cap = max(sublane, ((R // min_row_steps) // sublane) * sublane)
        rows = min(rows, cap)

    if rows >= R:
        rows = R  # full-extent block dim is always legal
    else:
        # Prefer an exact divisor of R so the final block isn't a ragged,
        # mostly-masked step (search downward in sublane multiples).
        for cand in range(rows, max(sublane, rows // 2) - 1, -sublane):
            if R % cand == 0:
                rows = cand
                break

    vmem_needed_bytes = vmem_elems(rows, tile_l) * itemsize
    return rows, tile_l, vmem_needed_bytes


def implicit_a(x, implicit):
    """x: (N, C, H, W); implicit: (1, C, 1, 1). Returns implicit + x."""
    N, C, H, W = x.shape
    assert implicit.shape == (1, C, 1, 1)

    # Match PyTorch type promotion (e.g. fp32 param + bf16 activation -> fp32).
    out_dtype = jnp.promote_types(x.dtype, implicit.dtype)
    itemsize = jnp.dtype(out_dtype).itemsize

    R = N * C          # row (sublane) extent
    L = H * W          # lane extent (full spatial plane -> lane-dense stores)

    # Lane-dense 2D views (cheap reshapes on contiguous NCHW; no transpose).
    x2 = x.astype(out_dtype).reshape(R, L)
    # Expand the per-channel parameter once, outside the grid loop.
    imp_col = jnp.broadcast_to(
        implicit.astype(out_dtype).reshape(1, C), (N, C)
    ).reshape(R, 1)

    tile_rows, tile_l, vmem_needed = _select_tiles(R, L, itemsize)
    grid = (pl.cdiv(R, tile_rows), pl.cdiv(L, tile_l))

    # Explicit scoped-VMEM limit covering the double-buffered in/out/imp tiles
    # with headroom; capped at 32 MiB, safe on every generation (<= v7x's
    # 64 MiB physical VMEM, well under v5e/v6e's 128 MiB physical).
    vmem_limit = int(min(max(vmem_needed + (4 << 20), 16 << 20), 32 << 20))

    out2 = pl.pallas_call(
        _implicit_a_kernel,
        out_shape=jax.ShapeDtypeStruct((R, L), out_dtype),
        grid_spec=pl.GridSpec(
            grid=grid,
            in_specs=[
                # TODO(synk): on v7x, sweep pipeline_mode=pl.Buffered(3) on this
                # spec if xprof shows exposed DMA start latency (re-check the
                # VMEM budget before keeping it).
                pl.BlockSpec((tile_rows, tile_l), lambda r, c: (r, c)),
                pl.BlockSpec((tile_rows, 1), lambda r, c: (r, 0)),
            ],
            out_specs=pl.BlockSpec((tile_rows, tile_l), lambda r, c: (r, c)),
        ),
        compiler_params=pltpu.CompilerParams(
            dimension_semantics=("parallel", "parallel"),
            vmem_limit_bytes=vmem_limit,
        ),
        cost_estimate=pl.CostEstimate(
            flops=R * L,
            transcendentals=0,
            bytes_accessed=(2 * R * L + R) * itemsize,
        ),
    )(x2, imp_col)

    return out2.reshape(N, C, H, W)


if __name__ == "__main__":
    key = jax.random.PRNGKey(0)
    k_imp, k_x = jax.random.split(key)

    N, C, H, W = 2, 4, 16, 16
    mean, std = 0.0, 0.02

    # Deterministic parameter init mirroring nn.init.normal_(mean=0, std=0.02)
    implicit = mean + std * jax.random.normal(k_imp, (1, C, 1, 1), dtype=jnp.float32)
    x = jax.random.normal(k_x, (N, C, H, W), dtype=jnp.float32)

    out = implicit_a(x, implicit)
    out = jax.block_until_ready(out)

    # Reference check (plain JAX broadcast add)
    ref = implicit + x
    assert out.shape == (N, C, H, W)
    assert out.dtype == ref.dtype
    assert jnp.allclose(out, ref, atol=1e-6), "mismatch vs reference"

    print("KERNEL_OK")
</pallas_src>

<mosaic_0001>
module attributes {stable_mosaic.version = 11 : i64} {
  func.func @_implicit_a_kernel(%arg0: i32, %arg1: i32, %arg2: memref<8x256xf32, #tpu.memory_space<vmem>>, %arg3: memref<8x1xf32, #tpu.memory_space<vmem>>, %arg4: memref<8x256xf32, #tpu.memory_space<vmem>>) attributes {dimension_semantics = [#tpu.dimension_semantics<parallel>, #tpu.dimension_semantics<parallel>], iteration_bounds = array<i64: 1, 1>, scalar_prefetch = 0 : i64, scratch_operands = 0 : i64, tpu.core_type = #tpu.core_type<tc>, window_params = [{transform_indices = @transform_0, window_bounds = array<i64: 8, 256>}, {transform_indices = @transform_1, window_bounds = array<i64: 8, 1>}, {transform_indices = @transform_2, window_bounds = array<i64: 8, 256>}]} {
    %c0 = arith.constant 0 : index
    %c0_0 = arith.constant 0 : index
    %0 = vector.load %arg2[%c0, %c0_0] : memref<8x256xf32, #tpu.memory_space<vmem>>, vector<8x256xf32>
    %c0_1 = arith.constant 0 : index
    %c0_2 = arith.constant 0 : index
    %1 = vector.load %arg3[%c0_1, %c0_2] : memref<8x1xf32, #tpu.memory_space<vmem>>, vector<8x1xf32>
    %2 = vector.broadcast %1 : vector<8x1xf32> to vector<8x256xf32>
    %3 = arith.addf %0, %2 : vector<8x256xf32>
    %c0_3 = arith.constant 0 : index
    %c0_4 = arith.constant 0 : index
    %4 = vector.load %arg4[%c0_3, %c0_4] : memref<8x256xf32, #tpu.memory_space<vmem>>, vector<8x256xf32>
    tpu.vector_store %arg4[%c0_3, %c0_4], %3 {strides = array<i32>} : memref<8x256xf32, #tpu.memory_space<vmem>>, vector<8x256xf32>,
    return
  }
  func.func @transform_0(%arg0: i32, %arg1: i32) -> (i32, i32) {
    %c0_i32 = arith.constant 0 : i32
    return %arg0, %arg1 : i32, i32
  }
  func.func @transform_1(%arg0: i32, %arg1: i32) -> (i32, i32) {
    %c0_i32 = arith.constant 0 : i32
    %c0_i32_0 = arith.constant 0 : i32
    return %arg0, %c0_i32 : i32, i32
  }
  func.func @transform_2(%arg0: i32, %arg1: i32) -> (i32, i32) {
    %c0_i32 = arith.constant 0 : i32
    return %arg0, %arg1 : i32, i32
  }
}

</mosaic_0001>

<llo_original>
// kernel: tpu_custom_call.1
$region0: #{tpu_custom_call.1}
  #allocation0 [shape = 'u32[]', space=smem, size = 0x4, offset = 0x4, fixed_abs, tag = 'smem constant byte address 0x4 - core index']
  #allocation1 [shape = 'u32[144,128]{1,0:T(1,128)}', space=vmem, size = 0x12000, scoped, tag = 'internal scratch']
  %s0 = inlined_call_operand.hbm [shape: f32[8,256], index: 0, kind: input, shape index: {}]
  %s1 = inlined_call_operand.vmem [shape: f32[8,1], index: 1, kind: input, shape index: {}]
  %s2 = inlined_call_operand.hbm [shape: f32[8,256], index: 2, kind: output, shape index: {}]
  %s3 = sld [smem:[#allocation0]]
  $region22: #{tpu_custom_call.1} parent=0
    _
  %s5 = ssub.s32 1, %s3
  %s6 = scalar_select 0, %s5, %s3
  $region1: #{tpu_custom_call.1} parent=0
    #allocation2 [shape = 'u8[8192]{0}', space=vmem, size = 0x2000, scoped, tag = 'input window, operand 0, single buffered']
    #allocation3 [shape = 's32[1]{0}', space=sflag, size = 0x4, scoped, tag = 'scoped memory for tpu_custom_call.1']
    #allocation4 [shape = 's32[1]{0}', space=sflag, size = 0x4, scoped, tag = 'scoped memory for tpu_custom_call.1']
    #allocation5 [shape = 'u8[8192]{0}', space=vmem, size = 0x2000, scoped, tag = 'output window, operand 0, single buffered']
    %7 = vsyncpa [#allocation3], 0
    %8 = vsyncpa [#allocation4], 0
    // Predicated region
    $region2: #{tpu_custom_call.1} parent=1 // pred_check
      _
    $region3: #{tpu_custom_call.1} parent=1 // pred_check_branch
      %10 = sbr.rel (0) target = $region5
    $region4: #{tpu_custom_call.1} parent=1 // pred_region
      %s12 = ssub.s32 256, 256
      %13 = vsyncadd [#allocation3], %s12
      %s15 = sshll.u32 [#allocation2], 4
      %s16 = int_to_ptr.vmem [resolvable:$true] %s15
      %18 = dma.hbm_to_vmem [thread:$0]  %s0, 256, %s16, [#allocation3]
    $region5: #{tpu_custom_call.1} parent=1 // pred_fallthru
      _
    // Predicated region
    $region6: #{tpu_custom_call.1} parent=1 // pred_check
      _
    $region7: #{tpu_custom_call.1} parent=1 // pred_check_branch
      %20 = sbr.rel (0) target = $region9
    $region8: #{tpu_custom_call.1} parent=1 // pred_region
      _
    $region9: #{tpu_custom_call.1} parent=1 // pred_fallthru
      _
    // Predicated region
    $region10: #{tpu_custom_call.1} parent=1 // pred_check
      _
    $region11: #{tpu_custom_call.1} parent=1 // pred_check_branch
      %22 = sbr.rel (0) target = $region13
    $region12: #{tpu_custom_call.1} parent=1 // pred_region
      %23 = dma.done [#allocation3], 256
    $region13: #{tpu_custom_call.1} parent=1 // pred_fallthru
      _
    %v24 = vld [vmem:[#allocation2] sm:$0xff]
    %v25 = vld [vmem:[#allocation2 + $0x8] sm:$0xff]
    %v26 = vld [vmem:[%s1] sm:$0xff]
    %28 = vset.pattern.permute.xlu0 0
    %29 = vperm.xlu0 %28, %v26
    %v30 = vpop.permute.xlu0 %29
    %v32 = vadd.f32 %v24, %v30
    %v33 = vadd.f32 %v25, %v30
    %34 = vst [vmem:[#allocation5] sm:$0xff] %v32
    %35 = vst [vmem:[#allocation5 + $0x8] sm:$0xff] %v33
    // Predicated region
    $region14: #{tpu_custom_call.1} parent=1 // pred_check
      _
    $region15: #{tpu_custom_call.1} parent=1 // pred_check_branch
      %37 = sbr.rel (0) target = $region17
    $region16: #{tpu_custom_call.1} parent=1 // pred_region
      %s39 = ssub.s32 256, 256
      %40 = vsyncadd [#allocation4], %s39
      %s42 = sshll.u32 [#allocation5], 4
      %s43 = int_to_ptr.vmem [resolvable:$true] %s42
      %45 = dma.vmem_to_hbm [thread:$0]  %s43, 256, %s2, [#allocation4]
    $region17: #{tpu_custom_call.1} parent=1 // pred_fallthru
      _
    // Predicated region
    $region18: #{tpu_custom_call.1} parent=1 // pred_check
      _
    $region19: #{tpu_custom_call.1} parent=1 // pred_check_branch
      %47 = sbr.rel (0) target = $region21
    $region20: #{tpu_custom_call.1} parent=1 // pred_region
      %48 = dma.done [#allocation4], 256
    $region21: #{tpu_custom_call.1} parent=1 // pred_fallthru
      _
    %49 = vsyncpa [#allocation3], 1
    %50 = vsyncpa [#allocation4], 1

</llo_original>
